<compile_context>
chip_gen: v7x
topology: tpu7x:2x2x1
jax: 0.10.0
libtpu: 0.0.40
codegen_flags: <defaults>
</compile_context>

<pallas_src>
import jax
import jax.numpy as jnp
from jax.experimental import pallas as pl
from jax.experimental.pallas import tpu as pltpu


def _round_up(x, m):
    return (x + m - 1) // m * m


def cat_scale_shift_kernel(x_ref, w_ref, b_ref, o_ref):
    # x_ref: (1, C, T)   w_ref, b_ref: (2, C, 1)   o_ref: (1, 2, C, T)
    x = x_ref[...]
    w = w_ref[...]
    b = b_ref[...]
    # Negation of the second half is already folded into w[1] (wrapper passes -weight[C:]),
    # so both halves are plain FMAs written directly into aligned output slabs.
    o_ref[:, 0, :, :] = x * w[0] + b[0]
    o_ref[:, 1, :, :] = x * w[1] + b[1]


def cat_scale_shift(x, weight, bias, *, max_lane_tile=8192,
                    vmem_budget_bytes=16 * 1024 * 1024):
    """x: (N, C, H, W); weight, bias: (2C,) -> (N, 2C, H, W)."""
    N, C, H, W = x.shape
    HW = H * W
    dtype = x.dtype
    bytes_per_elem = jnp.dtype(dtype).itemsize

    # Fold the minus of the "-x" half into its weights; bias is unchanged.
    # TODO(synk): params are applied in x.dtype; match the PyTorch module's precision for bf16 inputs.
    w2 = jnp.stack([weight[:C], -weight[C:]]).reshape(2, C, 1).astype(dtype)
    b2 = jnp.stack([bias[:C], bias[C:]]).reshape(2, C, 1).astype(dtype)

    # ---- lane-tile sizing: keep double-buffered (in + out) blocks well under VMEM ----
    sublanes = 32 // bytes_per_elem            # f32: 8, bf16: 16
    c_pad = _round_up(C, sublanes)             # sublane padding of each (C, T) tile
    per_lane_bytes = 2 * 3 * c_pad * bytes_per_elem   # dbl-buffered: in (C,T) + out (2,C,T)
    t_budget = max(128, vmem_budget_bytes // per_lane_bytes // 128 * 128)
    hw_128 = _round_up(HW, 128)                # lane-dense: multiples of 128 only
    T = min(max_lane_tile, t_budget, hw_128)
    HW_pad = _round_up(HW, T)                  # pad so lane tiles divide evenly

    xr = x.reshape(N, C, HW)
    if HW_pad != HW:
        xr = jnp.pad(xr, ((0, 0), (0, 0), (0, HW_pad - HW)))

    grid = (N, HW_pad // T)

    out = pl.pallas_call(
        cat_scale_shift_kernel,
        out_shape=jax.ShapeDtypeStruct((N, 2, C, HW_pad), dtype),
        grid=grid,
        in_specs=[
            pl.BlockSpec((1, C, T), lambda n, t: (n, 0, t)),
            pl.BlockSpec((2, C, 1), lambda n, t: (0, 0, 0)),   # VMEM-resident params
            pl.BlockSpec((2, C, 1), lambda n, t: (0, 0, 0)),
        ],
        out_specs=pl.BlockSpec((1, 2, C, T), lambda n, t: (n, 0, 0, t)),
        compiler_params=pltpu.CompilerParams(
            dimension_semantics=("parallel", "parallel"),
            vmem_limit_bytes=32 * 1024 * 1024,
        ),
    )(xr, w2, b2)

    if HW_pad != HW:
        out = out[:, :, :, :HW]
    # (N, 2, C, HW) is exactly the cat([x, -x], dim=1) view -> free contiguous reshape.
    return out.reshape(N, 2 * C, H, W)


def cat_scale_shift_ref(x, weight, bias):
    cat = jnp.concatenate([x, -x], axis=1)
    return cat * weight.reshape(1, -1, 1, 1) + bias.reshape(1, -1, 1, 1)


if __name__ == "__main__":
    # Small shapes consistent with the module's NCHW forward.
    N, C, H, W = 2, 4, 16, 16
    key = jax.random.PRNGKey(0)
    kx, kw, kb = jax.random.split(key, 3)
    x = jax.random.normal(kx, (N, C, H, W), dtype=jnp.float32)
    # Learnable per-channel params; non-constant values exercise the folded negation.
    weight = jax.random.normal(kw, (2 * C,), dtype=jnp.float32)
    bias = jax.random.normal(kb, (2 * C,), dtype=jnp.float32)

    out = jax.block_until_ready(cat_scale_shift(x, weight, bias))
    ref = cat_scale_shift_ref(x, weight, bias)

    assert out.shape == (N, 2 * C, H, W)
    assert jnp.allclose(out, ref, atol=1e-6, rtol=1e-6)

    print("KERNEL_OK")
</pallas_src>

<mosaic_0001>
module attributes {stable_mosaic.version = 11 : i64} {
  func.func @cat_scale_shift_kernel(%arg0: i32, %arg1: i32, %arg2: memref<1x4x256xf32, #tpu.memory_space<vmem>>, %arg3: memref<2x4x1xf32, #tpu.memory_space<vmem>>, %arg4: memref<2x4x1xf32, #tpu.memory_space<vmem>>, %arg5: memref<1x2x4x256xf32, #tpu.memory_space<vmem>>) attributes {dimension_semantics = [#tpu.dimension_semantics<parallel>, #tpu.dimension_semantics<parallel>], iteration_bounds = array<i64: 2, 1>, scalar_prefetch = 0 : i64, scratch_operands = 0 : i64, tpu.core_type = #tpu.core_type<tc>, window_params = [{transform_indices = @transform_0, window_bounds = array<i64: 1, 4, 256>}, {pipeline_mode = #tpu.pipeline_mode<synchronous>, transform_indices = @transform_1, window_bounds = array<i64: 2, 4, 1>}, {pipeline_mode = #tpu.pipeline_mode<synchronous>, transform_indices = @transform_2, window_bounds = array<i64: 2, 4, 1>}, {transform_indices = @transform_3, window_bounds = array<i64: 1, 2, 4, 256>}]} {
    %c0 = arith.constant 0 : index
    %c0_0 = arith.constant 0 : index
    %c0_1 = arith.constant 0 : index
    %0 = vector.load %arg2[%c0, %c0_0, %c0_1] : memref<1x4x256xf32, #tpu.memory_space<vmem>>, vector<1x4x256xf32>
    %c0_2 = arith.constant 0 : index
    %c0_3 = arith.constant 0 : index
    %c0_4 = arith.constant 0 : index
    %1 = vector.load %arg3[%c0_2, %c0_3, %c0_4] : memref<2x4x1xf32, #tpu.memory_space<vmem>>, vector<2x4x1xf32>
    %c0_5 = arith.constant 0 : index
    %c0_6 = arith.constant 0 : index
    %c0_7 = arith.constant 0 : index
    %2 = vector.load %arg4[%c0_5, %c0_6, %c0_7] : memref<2x4x1xf32, #tpu.memory_space<vmem>>, vector<2x4x1xf32>
    %3 = vector.extract_strided_slice %1 {offsets = [0, 0, 0], sizes = [1, 4, 1], strides = [1, 1, 1]} : vector<2x4x1xf32> to vector<1x4x1xf32>
    %4 = vector.shape_cast %3 : vector<1x4x1xf32> to vector<4x1xf32>
    %5 = vector.shape_cast %4 : vector<4x1xf32> to vector<1x4x1xf32>
    %6 = vector.broadcast %5 : vector<1x4x1xf32> to vector<1x4x256xf32>
    %7 = arith.mulf %0, %6 : vector<1x4x256xf32>
    %8 = vector.extract_strided_slice %2 {offsets = [0, 0, 0], sizes = [1, 4, 1], strides = [1, 1, 1]} : vector<2x4x1xf32> to vector<1x4x1xf32>
    %9 = vector.shape_cast %8 : vector<1x4x1xf32> to vector<4x1xf32>
    %10 = vector.shape_cast %9 : vector<4x1xf32> to vector<1x4x1xf32>
    %11 = vector.broadcast %10 : vector<1x4x1xf32> to vector<1x4x256xf32>
    %12 = arith.addf %7, %11 : vector<1x4x256xf32>
    %c0_8 = arith.constant 0 : index
    %c0_9 = arith.constant 0 : index
    %c0_10 = arith.constant 0 : index
    %c0_11 = arith.constant 0 : index
    %13 = vector.load %arg5[%c0_8, %c0_9, %c0_10, %c0_11] : memref<1x2x4x256xf32, #tpu.memory_space<vmem>>, vector<1x1x4x256xf32>
    %14 = vector.shape_cast %13 : vector<1x1x4x256xf32> to vector<1x4x256xf32>
    %15 = vector.shape_cast %12 : vector<1x4x256xf32> to vector<1x1x4x256xf32>
    tpu.vector_store %arg5[%c0_8, %c0_9, %c0_10, %c0_11], %15 {strides = array<i32>} : memref<1x2x4x256xf32, #tpu.memory_space<vmem>>, vector<1x1x4x256xf32>,
    %16 = vector.extract_strided_slice %1 {offsets = [1, 0, 0], sizes = [1, 4, 1], strides = [1, 1, 1]} : vector<2x4x1xf32> to vector<1x4x1xf32>
    %17 = vector.shape_cast %16 : vector<1x4x1xf32> to vector<4x1xf32>
    %18 = vector.shape_cast %17 : vector<4x1xf32> to vector<1x4x1xf32>
    %19 = vector.broadcast %18 : vector<1x4x1xf32> to vector<1x4x256xf32>
    %20 = arith.mulf %0, %19 : vector<1x4x256xf32>
    %21 = vector.extract_strided_slice %2 {offsets = [1, 0, 0], sizes = [1, 4, 1], strides = [1, 1, 1]} : vector<2x4x1xf32> to vector<1x4x1xf32>
    %22 = vector.shape_cast %21 : vector<1x4x1xf32> to vector<4x1xf32>
    %23 = vector.shape_cast %22 : vector<4x1xf32> to vector<1x4x1xf32>
    %24 = vector.broadcast %23 : vector<1x4x1xf32> to vector<1x4x256xf32>
    %25 = arith.addf %20, %24 : vector<1x4x256xf32>
    %c0_12 = arith.constant 0 : index
    %c1 = arith.constant 1 : index
    %c0_13 = arith.constant 0 : index
    %c0_14 = arith.constant 0 : index
    %26 = vector.load %arg5[%c0_12, %c1, %c0_13, %c0_14] : memref<1x2x4x256xf32, #tpu.memory_space<vmem>>, vector<1x1x4x256xf32>
    %27 = vector.shape_cast %26 : vector<1x1x4x256xf32> to vector<1x4x256xf32>
    %28 = vector.shape_cast %25 : vector<1x4x256xf32> to vector<1x1x4x256xf32>
    tpu.vector_store %arg5[%c0_12, %c1, %c0_13, %c0_14], %28 {strides = array<i32>} : memref<1x2x4x256xf32, #tpu.memory_space<vmem>>, vector<1x1x4x256xf32>,
    return
  }
  func.func @transform_0(%arg0: i32, %arg1: i32) -> (i32, i32, i32) {
    %c0_i32 = arith.constant 0 : i32
    %c0_i32_0 = arith.constant 0 : i32
    return %arg0, %c0_i32, %arg1 : i32, i32, i32
  }
  func.func @transform_1(%arg0: i32, %arg1: i32) -> (i32, i32, i32) {
    %c0_i32 = arith.constant 0 : i32
    %c0_i32_0 = arith.constant 0 : i32
    %c0_i32_1 = arith.constant 0 : i32
    %c0_i32_2 = arith.constant 0 : i32
    return %c0_i32, %c0_i32_0, %c0_i32_1 : i32, i32, i32
  }
  func.func @transform_2(%arg0: i32, %arg1: i32) -> (i32, i32, i32) {
    %c0_i32 = arith.constant 0 : i32
    %c0_i32_0 = arith.constant 0 : i32
    %c0_i32_1 = arith.constant 0 : i32
    %c0_i32_2 = arith.constant 0 : i32
    return %c0_i32, %c0_i32_0, %c0_i32_1 : i32, i32, i32
  }
  func.func @transform_3(%arg0: i32, %arg1: i32) -> (i32, i32, i32, i32) {
    %c0_i32 = arith.constant 0 : i32
    %c0_i32_0 = arith.constant 0 : i32
    %c0_i32_1 = arith.constant 0 : i32
    return %arg0, %c0_i32, %c0_i32_0, %arg1 : i32, i32, i32, i32
  }
}

</mosaic_0001>

<llo_original>
// kernel: tpu_custom_call.1
$region0: #{tpu_custom_call.1}
  #allocation0 [shape = 'u32[]', space=smem, size = 0x4, offset = 0x4, fixed_abs, tag = 'smem constant byte address 0x4 - core index']
  #allocation1 [shape = 'u32[144,128]{1,0:T(1,128)}', space=vmem, size = 0x12000, scoped, tag = 'internal scratch']
  %s0 = inlined_call_operand.vmem [shape: f32[2,4,256], index: 0, kind: input, shape index: {}]
  %s1 = inlined_call_operand.vmem [shape: f32[2,4,1], index: 1, kind: input, shape index: {}]
  %s2 = inlined_call_operand.vmem [shape: f32[2,4,1], index: 2, kind: input, shape index: {}]
  %s3 = inlined_call_operand.hbm [shape: f32[2,2,4,256], index: 3, kind: output, shape index: {}]
  %s4 = sld [smem:[#allocation0]]
  $region45: #{tpu_custom_call.1} parent=0
    _
  %s6 = ssub.s32 1, %s4
  %s7 = scalar_select 0, %s6, %s4
  $region1: #{tpu_custom_call.1} parent=0
    #allocation2 [shape = 'u8[16384]{0}', space=vmem, size = 0x4000, scoped, tag = 'output window, operand 0']
    #allocation3 [shape = 's32[2]{0}', space=sflag, size = 0x8, scoped, tag = 'scoped memory for tpu_custom_call.1']
    %8 = vsyncpa [#allocation3], 0
    %s9 = scalar_lea.sflag [#allocation3], 1
    %10 = vsyncpa %s9, 0
    loop: start=0, step=1, limit=4
    $region2: #{tpu_custom_call.1} parent=1 // loop_pre_header
      _
    $region3: #{tpu_custom_call.1} parent=1 // loop_header
      %s12 = sphi 0, %s16
      %p13 = scmp.ge.s32.totalorder %s12, 4
      %s19 = sphi 0, %s31
      %s20 = sphi 0, %s27
      %s21 = sphi 0, %s19
      %s22 = sphi 0, %s20
      %s23 = sphi 0, %s21
      %s24 = sphi 0, %s22
      %s36 = sphi 0, %s38
      %s39 = sphi 0, %s36
      %s40 = sphi 0, %s39
      %s56 = sphi 0, %s40
      %s60 = sphi 0, %s60
      %s62 = sphi 0, %s60
      %s63 = sphi 0, %s62
      %s77 = sphi 0, %s63
      %s81 = sphi 0, %s81
      %s83 = sphi 0, %s81
      %s84 = sphi 0, %s83
      %s98 = sphi 0, %s84
      %s106 = sphi 0, %s108
      %s109 = sphi 0, %s106
      %s110 = sphi 0, %s109
      %s126 = sphi 0, %s110
    $region4: #{tpu_custom_call.1} parent=1 // loop_header_branch
      %15 = sbr.rel (%p13) target = $region8
    $region5: #{tpu_custom_call.1} parent=1 // loop_body
      %s17 = ssub.s32 %s12, 1
      %s18 = ssub.s32 %s12, 2
      %s25 = sadd.s32 1, %s20
      %p26 = scmp.ge.s32.totalorder %s25, 1
      %s27 = scalar_select %p26, 0, %s25
      %s28 = sadd.s32 1, %s19
      %s29 = scalar_select %p26, %s28, %s19
      %p30 = scmp.ge.s32.totalorder %s29, 2
      %s31 = scalar_select %p30, 0, %s29
      %s32 = ssub.s32 %s19, %s31
      %s33 = ssub.s32 %s20, %s27
      %s34 = sor.u32 %s32, %s33
      %p35 = scmp.eq.s32.totalorder %s34, 0
      %s37 = sadd.s32 %s36, 1
      %s38 = scalar_select %p35, %s36, %s37
      %p41 = pneg %p35
      %p42 = scmp.eq.s32.totalorder %s12, 1
      %p43 = por %p41, %p42
      %p44 = scmp.ne.s32.totalorder %s36, %s39
      %p45 = scmp.eq.s32.totalorder %s12, 0
      %p46 = por %p44, %p45
      %p47 = scmp.ne.s32.totalorder %s36, %s39
      %p48 = scmp.eq.s32.totalorder %s17, 1
      %p49 = por %p47, %p48
      %p50 = scmp.ne.s32.totalorder %s39, %s40
      %p51 = scmp.eq.s32.totalorder %s17, 0
      %p52 = por %p50, %p51
      %p53 = scmp.ne.s32.totalorder %s39, %s40
      %p54 = scmp.eq.s32.totalorder %s18, 1
      %p55 = por %p53, %p54
      %p57 = scmp.ne.s32.totalorder %s40, %s56
      %p58 = scmp.eq.s32.totalorder %s18, 0
      %p59 = por %p57, %p58
      %s61 = sadd.s32 %s60, 1
      %p64 = scmp.eq.s32.totalorder %s12, 1
      %p65 = scmp.ne.s32.totalorder %s60, %s62
      %p66 = scmp.eq.s32.totalorder %s12, 0
      %p67 = por %p65, %p66
      %p68 = scmp.ne.s32.totalorder %s60, %s62
      %p69 = scmp.eq.s32.totalorder %s17, 1
      %p70 = por %p68, %p69
      %p71 = scmp.ne.s32.totalorder %s62, %s63
      %p72 = scmp.eq.s32.totalorder %s17, 0
      %p73 = por %p71, %p72
      %p74 = scmp.ne.s32.totalorder %s62, %s63
      %p75 = scmp.eq.s32.totalorder %s18, 1
      %p76 = por %p74, %p75
      %p78 = scmp.ne.s32.totalorder %s63, %s77
      %p79 = scmp.eq.s32.totalorder %s18, 0
      %p80 = por %p78, %p79
      %s82 = sadd.s32 %s81, 1
      %p85 = scmp.eq.s32.totalorder %s12, 1
      %p86 = scmp.ne.s32.totalorder %s81, %s83
      %p87 = scmp.eq.s32.totalorder %s12, 0
      %p88 = por %p86, %p87
      %p89 = scmp.ne.s32.totalorder %s81, %s83
      %p90 = scmp.eq.s32.totalorder %s17, 1
      %p91 = por %p89, %p90
      %p92 = scmp.ne.s32.totalorder %s83, %s84
      %p93 = scmp.eq.s32.totalorder %s17, 0
      %p94 = por %p92, %p93
      %p95 = scmp.ne.s32.totalorder %s83, %s84
      %p96 = scmp.eq.s32.totalorder %s18, 1
      %p97 = por %p95, %p96
      %p99 = scmp.ne.s32.totalorder %s84, %s98
      %p100 = scmp.eq.s32.totalorder %s18, 0
      %p101 = por %p99, %p100
      %s102 = ssub.s32 %s19, %s31
      %s103 = ssub.s32 %s20, %s27
      %s104 = sor.u32 %s102, %s103
      %p105 = scmp.eq.s32.totalorder %s104, 0
      %s107 = sadd.s32 %s106, 1
      %s108 = scalar_select %p105, %s106, %s107
      %p111 = pneg %p105
      %p112 = scmp.eq.s32.totalorder %s12, 1
      %p113 = por %p111, %p112
      %p114 = scmp.ne.s32.totalorder %s106, %s109
      %p115 = scmp.eq.s32.totalorder %s12, 0
      %p116 = por %p114, %p115
      %p117 = scmp.ne.s32.totalorder %s106, %s109
      %p118 = scmp.eq.s32.totalorder %s17, 1
      %p119 = por %p117, %p118
      %p120 = scmp.ne.s32.totalorder %s109, %s110
      %p121 = scmp.eq.s32.totalorder %s17, 0
      %p122 = por %p120, %p121
      %p123 = scmp.ne.s32.totalorder %s109, %s110
      %p124 = scmp.eq.s32.totalorder %s18, 1
      %p125 = por %p123, %p124
      %p127 = scmp.ne.s32.totalorder %s110, %s126
      %p128 = scmp.eq.s32.totalorder %s18, 0
      %p129 = por %p127, %p128
      %p130 = scmp.le.s32.totalorder 1, %s12
      %p131 = scmp.lt.s32.totalorder %s12, 3
      %p132 = pnand %p130, %p131
      %p133 = pneg %p132
      // Predicated region
      $region9: #{tpu_custom_call.1} parent=5 // pred_check
        _
      $region10: #{tpu_custom_call.1} parent=5 // pred_check_branch
        %135 = sbr.rel (%p132) target = $region12
      $region11: #{tpu_custom_call.1} parent=5 // pred_region
        %s136 = ssub.s32 %s12, 1
        // Predicated region
        $region13: #{tpu_custom_call.1} parent=11 // pred_check
          %p137 = pneg %p73
        $region14: #{tpu_custom_call.1} parent=11 // pred_check_branch
          %139 = sbr.rel (%p137) target = $region16
        $region15: #{tpu_custom_call.1} parent=11 // pred_region
          _
        $region16: #{tpu_custom_call.1} parent=11 // pred_fallthru
          _
        // Predicated region
        $region17: #{tpu_custom_call.1} parent=11 // pred_check
          %p140 = pneg %p94
        $region18: #{tpu_custom_call.1} parent=11 // pred_check_branch
          %142 = sbr.rel (%p140) target = $region20
        $region19: #{tpu_custom_call.1} parent=11 // pred_region
          _
        $region20: #{tpu_custom_call.1} parent=11 // pred_fallthru
          _
      $region12: #{tpu_custom_call.1} parent=5 // pred_fallthru
        _
      %p143 = scmp.lt.s32.totalorder %s12, 2
      // Predicated region
      $region21: #{tpu_custom_call.1} parent=5 // pred_check
        %p144 = pneg %p143
      $region22: #{tpu_custom_call.1} parent=5 // pred_check_branch
        %146 = sbr.rel (%p144) target = $region24
      $region23: #{tpu_custom_call.1} parent=5 // pred_region
        // Predicated region
        $region25: #{tpu_custom_call.1} parent=23 // pred_check
          %p147 = pneg %p46
        $region26: #{tpu_custom_call.1} parent=23 // pred_check_branch
          %149 = sbr.rel (%p147) target = $region28
        $region27: #{tpu_custom_call.1} parent=23 // pred_region
          %s150 = smul.u32 2, %s20
          %p151 = scmp.lt.s32.totalorder %s19, 1
          %s152 = scalar_select %p151, %s19, 1
          %p153 = scmp.lt.s32.totalorder %s150, 1
          %s154 = scalar_select %p153, %s150, 1
          %s155 = smul.addr %s152, 2
          %s156 = sadd.s32 %s154, %s155
          %s157 = smul.addr %s156, 4
          %s158 = scalar_lea.vmem %s0, %s157
          %s159 = smul.u32 2, %s20
        $region28: #{tpu_custom_call.1} parent=23 // pred_fallthru
          _
      $region24: #{tpu_custom_call.1} parent=5 // pred_fallthru
        _
      %p160 = scmp.le.s32.totalorder 1, %s12
      %p161 = scmp.lt.s32.totalorder %s12, 3
      %p162 = pnand %p160, %p161
      %p163 = pneg %p162
      // Predicated region
      $region29: #{tpu_custom_call.1} parent=5 // pred_check
        _
      $region30: #{tpu_custom_call.1} parent=5 // pred_check_branch
        %165 = sbr.rel (%p162) target = $region32
      $region31: #{tpu_custom_call.1} parent=5 // pred_region
        %s166 = ssub.s32 %s12, 1
        %s167 = smul.u32 2, %s22
        %p168 = scmp.lt.s32.totalorder %s21, 1
        %s169 = scalar_select %p168, %s21, 1
        %p170 = scmp.lt.s32.totalorder %s167, 1
        %s171 = scalar_select %p170, %s167, 1
        %s172 = smul.addr %s169, 2
        %s173 = sadd.s32 %s171, %s172
        %s174 = smul.addr %s173, 4
        %s175 = scalar_lea.vmem %s0, %s174
        %p176 = pneg %p52
        %p177 = pneg %p49
        %p178 = pneg %p73
        %p179 = pneg %p70
        %p180 = pneg %p94
        %p181 = pneg %p91
        %p182 = pneg %p122
        %p183 = pneg %p119
        %s184 = sand.u32 %s109, 1
        %s185 = scalar_lea.sflag [#allocation3], %s184
        %s186 = sand.u32 %s109, 1
        %s187 = smul.addr %s186, 16
        %s188 = scalar_lea.vmem [#allocation2], %s187
        %s189 = smul.u32 2, %s22
        %p190 = scmp.lt.s32.totalorder %s21, 1
        %s191 = scalar_select %p190, %s21, 1
        %p192 = scmp.lt.s32.totalorder %s189, 1
        %s193 = scalar_select %p192, %s189, 1
        %s194 = smul.addr %s191, 2
        %s195 = sadd.s32 %s193, %s194
        %s196 = smul.addr %s195, 4
        %s197 = scalar_lea.vmem %s0, %s196
        %s198 = smul.u32 2, %s22
        %s199 = smul.u32 2, %s22
        %v200 = vld [vmem:[%s197] sm:$0xff]
        %v201 = vld [vmem:[%s1] sm:$0xf]
        %v202 = vld [vmem:[%s1 + $0x4] sm:$0xf]
        %v203 = vld [vmem:[%s2] sm:$0xf]
        %v204 = vld [vmem:[%s2 + $0x4] sm:$0xf]
        %206 = vset.pattern.permute.xlu0 0
        %207 = vperm.xlu0 %206, %v201
        %v208 = vpop.permute.xlu0 %207
        %v210 = vunpack.c.l.s4 839922192
        %v211 = vunpack.c.0.s8 %v210
        %v212 = vlaneseq
        %v213 = vshrl.u32 %v212, 7
        %v214 = vsub.s32 %v211, %v213
        %v215 = vrot.slane %v208, %v214
        %v217 = vmul.f32 %v200, %v215
        %219 = vset.pattern.permute.xlu0 0
        %220 = vperm.xlu0 %219, %v203
        %v221 = vpop.permute.xlu0 %220
        %v223 = vunpack.c.l.s4 839922192
        %v224 = vunpack.c.0.s8 %v223
        %v225 = vlaneseq
        %v226 = vshrl.u32 %v225, 7
        %v227 = vsub.s32 %v224, %v226
        %v228 = vrot.slane %v221, %v227
        %v230 = vadd.f32 %v217, %v228
        %231 = vst [vmem:[%s188] sm:$0xff] %v230
        %233 = vset.pattern.permute.xlu0 0
        %234 = vperm.xlu0 %233, %v202
        %v235 = vpop.permute.xlu0 %234
        %v237 = vunpack.c.l.s4 839922192
        %v238 = vunpack.c.0.s8 %v237
        %v239 = vlaneseq
        %v240 = vshrl.u32 %v239, 7
        %v241 = vsub.s32 %v238, %v240
        %v242 = vrot.slane %v235, %v241
        %v244 = vmul.f32 %v200, %v242
        %246 = vset.pattern.permute.xlu0 0
        %247 = vperm.xlu0 %246, %v204
        %v248 = vpop.permute.xlu0 %247
        %v250 = vunpack.c.l.s4 839922192
        %v251 = vunpack.c.0.s8 %v250
        %v252 = vlaneseq
        %v253 = vshrl.u32 %v252, 7
        %v254 = vsub.s32 %v251, %v253
        %v255 = vrot.slane %v248, %v254
        %v257 = vadd.f32 %v244, %v255
        %s258 = scalar_lea.vmem %s188, 8 [#allocation2]
        %259 = vst [vmem:[%s258] sm:$0xff] %v257
        %s260 = sand.u32 %s109, 1
        %s261 = scalar_lea.sflag [#allocation3], %s260
        %s262 = sand.u32 %s109, 1
        %s263 = smul.addr %s262, 16
        %s264 = scalar_lea.vmem [#allocation2], %s263
        // Predicated region
        $region33: #{tpu_custom_call.1} parent=31 // pred_check
          %p265 = pneg %p119
        $region34: #{tpu_custom_call.1} parent=31 // pred_check_branch
          %267 = sbr.rel (%p265) target = $region36
        $region35: #{tpu_custom_call.1} parent=31 // pred_region
          %s268 = smul.u32 2, %s22
          %s270 = ssub.s32 256, 256
          %271 = vsyncadd %s261, %s270
          %s272 = smul.addr %s21, 4
          %s273 = sadd.s32 %s268, %s272
          %s274 = smul.addr %s273, 64
          %s275 = scalar_lea.hbm %s3, %s274
          %s276 = sshll.u32 %s264, 4
          %s277 = int_to_ptr.vmem [resolvable:$true] %s276
          %282 = dma.vmem_to_hbm [thread:$0]  %s277, 256, %s275, %s261, 128, 128, 8
        $region36: #{tpu_custom_call.1} parent=31 // pred_fallthru
          _
      $region32: #{tpu_custom_call.1} parent=5 // pred_fallthru
        _
      %p283 = scmp.le.s32.totalorder 2, %s12
      // Predicated region
      $region37: #{tpu_custom_call.1} parent=5 // pred_check
        %p284 = pneg %p283
      $region38: #{tpu_custom_call.1} parent=5 // pred_check_branch
        %286 = sbr.rel (%p284) target = $region40
      $region39: #{tpu_custom_call.1} parent=5 // pred_region
        %s287 = ssub.s32 %s12, 2
        // Predicated region
        $region41: #{tpu_custom_call.1} parent=39 // pred_check
          %p288 = pneg %p125
        $region42: #{tpu_custom_call.1} parent=39 // pred_check_branch
          %290 = sbr.rel (%p288) target = $region44
        $region43: #{tpu_custom_call.1} parent=39 // pred_region
          %s291 = sand.u32 %s110, 1
          %s292 = scalar_lea.sflag [#allocation3], %s291
          %s293 = sand.u32 %s110, 1
          %s294 = smul.addr %s293, 16
          %s295 = scalar_lea.vmem [#allocation2], %s294
          %296 = dma.done %s292, 256
        $region44: #{tpu_custom_call.1} parent=39 // pred_fallthru
          _
      $region40: #{tpu_custom_call.1} parent=5 // pred_fallthru
        _
    $region6: #{tpu_custom_call.1} parent=1 // loop_footer
      %s16 = sadd.s32 1, %s12
    $region7: #{tpu_custom_call.1} parent=1 // loop_footer_branch
      %11 = sbr.rel target = $region3
    $region8: #{tpu_custom_call.1} parent=1 // loop_exit
      _
    %297 = vsyncpa [#allocation3], 1
    %s298 = scalar_lea.sflag [#allocation3], 1
    %299 = vsyncpa %s298, 1

</llo_original>
